<compile_context>
chip_gen: v7x
topology: tpu7x:2x2x1
jax: 0.10.0
libtpu: 0.0.40
codegen_flags: <defaults>
</compile_context>

<pallas_src>
import functools

import jax
import jax.numpy as jnp
import numpy as np
from jax.experimental import pallas as pl
from jax.experimental.pallas import tpu as pltpu


def _tat_kernel(ts_ref, params_ref, out_ref, *, inv_deltat, rows):
    # ts_ref:     (TN, 1) float32 timestamps tile
    # params_ref: (2, D)  float32; row 0 = [W, W], row 1 = [0...0, pi/2...pi/2]
    # out_ref:    (TN, D) encodings
    t = ts_ref[...]                                      # (TN, 1)
    idx = jnp.floor(t * jnp.float32(inv_deltat))         # exact small ints, kept in f32
    idx = jnp.clip(idx, 0.0, jnp.float32(rows - 1))
    w_full = params_ref[0:1, :]                          # (1, D)
    phase = params_ref[1:2, :]                           # (1, D)
    # [sin(idx*W), cos(idx*W)] == sin(idx*[W,W] + [0,pi/2]) -> one 128-lane-wide sin and a
    # single unmasked lane-dense store.
    out_ref[...] = jnp.sin(idx * w_full + phase).astype(out_ref.dtype)


def tat_encoder_params(dimension: int, max_timescale: float = 10000.0):
    """Deterministic 'parameters' of TATEncoder packed as (2, D): [W_full; phase]."""
    assert dimension % 2 == 0, "TAT time encoding dimension must be even"
    half = dimension // 2
    w_inv_log = np.arange(half) * 2.0 / (dimension - 2) * np.log(max_timescale)
    w = 1.0 / np.exp(w_inv_log)                                   # (D/2,)
    w_full = np.concatenate([w, w]).astype(np.float32)            # (D,)
    phase = np.concatenate(
        [np.zeros(half), np.full(half, np.pi / 2.0)]).astype(np.float32)
    return jnp.asarray(np.stack([w_full, phase], axis=0))         # (2, D)


def _round_up(x: int, m: int) -> int:
    return ((x + m - 1) // m) * m


@functools.partial(
    jax.jit, static_argnames=("maxt", "mint", "rows", "dimension", "out_dtype"))
def tat_encoder_forward(timestamps, params, *, maxt, mint=0.0, rows=50000,
                        dimension=128, out_dtype=jnp.float32):
    """Pallas implementation of TATEncoder.forward (discrete='uniform').

    out_dtype=jnp.bfloat16 is strongly recommended for downstream embedding use:
    this kernel is output-write bound (~512 B/row written vs 4 B/row read), so bf16
    halves HBM traffic. Default stays f32 to match the torch module exactly.
    """
    del mint  # unused by the torch forward as well
    inv_deltat = float(rows) / float(maxt)  # 1 / deltat, precomputed reciprocal

    orig_shape = timestamps.shape
    ts = timestamps.reshape(-1, 1).astype(jnp.float32)   # (n, 1)
    n = ts.shape[0]

    # Row tile: large enough to amortise the ~0.35us fixed per-grid-step overhead and sit
    # at the HBM roofline, capped at 4096 (see header notes on the (TN,1) VMEM padding and
    # v5e's 16 MiB scoped default), and chosen so the grid has >= 2 steps whenever n > 8
    # (lets "parallel" semantics use both v7x TensorCores). No wrapper-side padding: the
    # final ragged block's reads are unspecified and its OOB writes are masked by Pallas.
    TN = max(8, min(4096, _round_up(pl.cdiv(n, 2), 8)))
    grid = (pl.cdiv(n, TN),)

    out = pl.pallas_call(
        functools.partial(_tat_kernel, inv_deltat=inv_deltat, rows=rows),
        out_shape=jax.ShapeDtypeStruct((n, dimension), out_dtype),
        grid_spec=pltpu.PrefetchScalarGridSpec(
            num_scalar_prefetch=0,
            grid=grid,
            in_specs=[
                pl.BlockSpec((TN, 1), lambda i: (i, 0)),           # timestamps tile
                pl.BlockSpec((2, dimension), lambda i: (0, 0)),    # [W_full; phase], resident
            ],
            out_specs=pl.BlockSpec((TN, dimension), lambda i: (i, 0)),
        ),
        compiler_params=pltpu.CompilerParams(
            dimension_semantics=("parallel",),
            vmem_limit_bytes=32 * 1024 * 1024),
    )(ts, params)

    return out.reshape(orig_shape + (dimension,))


def _reference(timestamps, maxt, rows, dimension):
    """Pure numpy reference mirroring the torch module exactly (f64-built table)."""
    deltat = maxt / rows
    ts = np.asarray(timestamps, dtype=np.float64)
    idx = (ts // deltat).astype(np.int64)
    idx = np.clip(idx, 0, rows - 1)
    T = np.arange(rows).reshape(rows, 1)
    w_inv_log = np.arange(dimension // 2) * 2.0 / (dimension - 2) * np.log(10000.0)
    W = 1.0 / np.exp(w_inv_log)
    pe = T @ W.reshape(1, dimension // 2)
    table = np.concatenate([np.sin(pe), np.cos(pe)], axis=1).astype(np.float32)
    return table[idx]


if __name__ == "__main__":
    # Module-consistent config. maxt=128 makes rows/maxt = 4.0 exact, so the f32 index
    # computation matches the torch f64 path bit-exactly.
    maxt = 128.0
    rows = 512
    dimension = 128

    key = jax.random.PRNGKey(0)
    k1, k2 = jax.random.split(key)
    params = tat_encoder_params(dimension)

    # Small shape: (batch=2, seq=8) -> n=16, TN=8, 2 grid steps.
    ts_small = jax.random.uniform(k1, (2, 8), dtype=jnp.float32, minval=0.0, maxval=maxt)
    out_small = jax.block_until_ready(
        tat_encoder_forward(ts_small, params, maxt=maxt, rows=rows, dimension=dimension))
    ref_small = _reference(np.asarray(ts_small), maxt, rows, dimension)
    # f32 kernel (fused sin/cos) vs f64-built reference table -> slightly loosened atol.
    np.testing.assert_allclose(np.asarray(out_small), ref_small, rtol=1e-4, atol=2e-4)

    # Larger shape with n not a multiple of TN: exercises the multi-step grid and the
    # masked ragged final block (no wrapper pad / output slice).
    ts_big = jax.random.uniform(k2, (2, 601), dtype=jnp.float32, minval=0.0, maxval=maxt)
    out_big = jax.block_until_ready(
        tat_encoder_forward(ts_big, params, maxt=maxt, rows=rows, dimension=dimension))
    ref_big = _reference(np.asarray(ts_big), maxt, rows, dimension)
    np.testing.assert_allclose(np.asarray(out_big), ref_big, rtol=1e-4, atol=2e-4)

    # Recommended fast path: bf16 output (halves HBM write traffic on this write-bound op).
    out_bf16 = jax.block_until_ready(
        tat_encoder_forward(ts_big, params, maxt=maxt, rows=rows, dimension=dimension,
                            out_dtype=jnp.bfloat16))
    np.testing.assert_allclose(np.asarray(out_bf16).astype(np.float32), ref_big,
                               rtol=0.0, atol=8e-3)

    print("KERNEL_OK")
</pallas_src>

<mosaic_0001>
module attributes {stable_mosaic.version = 11 : i64} {
  func.func @_tat_kernel(%arg0: i32, %arg1: memref<8x1xf32, #tpu.memory_space<vmem>>, %arg2: memref<2x128xf32, #tpu.memory_space<vmem>>, %arg3: memref<8x128xf32, #tpu.memory_space<vmem>>) attributes {dimension_semantics = [#tpu.dimension_semantics<parallel>], iteration_bounds = array<i64: 2>, scalar_prefetch = 0 : i64, scratch_operands = 0 : i64, tpu.core_type = #tpu.core_type<tc>, window_params = [{transform_indices = @transform_0, window_bounds = array<i64: 8, 1>}, {pipeline_mode = #tpu.pipeline_mode<synchronous>, transform_indices = @transform_1, window_bounds = array<i64: 2, 128>}, {transform_indices = @transform_2, window_bounds = array<i64: 8, 128>}]} {
    %c0 = arith.constant 0 : index
    %c0_0 = arith.constant 0 : index
    %0 = vector.load %arg1[%c0, %c0_0] : memref<8x1xf32, #tpu.memory_space<vmem>>, vector<8x1xf32>
    %cst = arith.constant 4.000000e+00 : f32
    %1 = vector.broadcast %cst : f32 to vector<8x1xf32>
    %2 = arith.mulf %0, %1 : vector<8x1xf32>
    %3 = math.floor %2 : vector<8x1xf32>
    %cst_1 = arith.constant 0.000000e+00 : f32
    %cst_2 = arith.constant 5.110000e+02 : f32
    %4 = vector.broadcast %cst_1 : f32 to vector<8x1xf32>
    %5 = arith.maximumf %4, %3 : vector<8x1xf32>
    %6 = vector.broadcast %cst_2 : f32 to vector<8x1xf32>
    %7 = arith.minimumf %6, %5 : vector<8x1xf32>
    %c0_3 = arith.constant 0 : index
    %c0_4 = arith.constant 0 : index
    %8 = vector.load %arg2[%c0_3, %c0_4] : memref<2x128xf32, #tpu.memory_space<vmem>>, vector<1x128xf32>
    %c1 = arith.constant 1 : index
    %c0_5 = arith.constant 0 : index
    %9 = vector.load %arg2[%c1, %c0_5] : memref<2x128xf32, #tpu.memory_space<vmem>>, vector<1x128xf32>
    %10 = vector.broadcast %7 : vector<8x1xf32> to vector<8x128xf32>
    %11 = vector.broadcast %8 : vector<1x128xf32> to vector<8x128xf32>
    %12 = arith.mulf %10, %11 : vector<8x128xf32>
    %13 = vector.broadcast %9 : vector<1x128xf32> to vector<8x128xf32>
    %14 = arith.addf %12, %13 : vector<8x128xf32>
    %15 = math.sin %14 : vector<8x128xf32>
    %c0_6 = arith.constant 0 : index
    %c0_7 = arith.constant 0 : index
    %16 = vector.load %arg3[%c0_6, %c0_7] : memref<8x128xf32, #tpu.memory_space<vmem>>, vector<8x128xf32>
    tpu.vector_store %arg3[%c0_6, %c0_7], %15 {strides = array<i32>} : memref<8x128xf32, #tpu.memory_space<vmem>>, vector<8x128xf32>,
    return
  }
  func.func @transform_0(%arg0: i32) -> (i32, i32) {
    %c0_i32 = arith.constant 0 : i32
    %c0_i32_0 = arith.constant 0 : i32
    return %arg0, %c0_i32 : i32, i32
  }
  func.func @transform_1(%arg0: i32) -> (i32, i32) {
    %c0_i32 = arith.constant 0 : i32
    %c0_i32_0 = arith.constant 0 : i32
    %c0_i32_1 = arith.constant 0 : i32
    return %c0_i32, %c0_i32_0 : i32, i32
  }
  func.func @transform_2(%arg0: i32) -> (i32, i32) {
    %c0_i32 = arith.constant 0 : i32
    %c0_i32_0 = arith.constant 0 : i32
    return %arg0, %c0_i32 : i32, i32
  }
}

</mosaic_0001>

<llo_original>
// kernel: tat_encoder_forward.1
$region0: #{tat_encoder_forward.1}
  #allocation0 [shape = 'u32[]', space=smem, size = 0x4, offset = 0x4, fixed_abs, tag = 'smem constant byte address 0x4 - core index']
  #allocation1 [shape = 'u32[144,128]{1,0:T(1,128)}', space=vmem, size = 0x12000, scoped, tag = 'internal scratch']
  %s0 = inlined_call_operand.vmem [shape: f32[16,1], index: 0, kind: input, shape index: {}]
  %s1 = inlined_call_operand.vmem [shape: f32[2,128], index: 1, kind: input, shape index: {}]
  %s2 = inlined_call_operand.hbm [shape: f32[16,128], index: 2, kind: output, shape index: {}]
  %s3 = sld [smem:[#allocation0]]
  $region41: #{tat_encoder_forward.1} parent=0
    _
  %s5 = ssub.s32 1, %s3
  %s6 = scalar_select 0, %s5, %s3
  $region1: #{tat_encoder_forward.1} parent=0
    #allocation2 [shape = 'u8[8192]{0}', space=vmem, size = 0x2000, scoped, tag = 'output window, operand 0']
    #allocation3 [shape = 's32[2]{0}', space=sflag, size = 0x8, scoped, tag = 'scoped memory for tat_encoder_forward.1']
    %7 = vsyncpa [#allocation3], 0
    %s8 = scalar_lea.sflag [#allocation3], 1
    %9 = vsyncpa %s8, 0
    loop: start=0, step=1, limit=4
    $region2: #{tat_encoder_forward.1} parent=1 // loop_pre_header
      _
    $region3: #{tat_encoder_forward.1} parent=1 // loop_header
      %s11 = sphi 0, %s15
      %p12 = scmp.ge.s32.totalorder %s11, 4
      %s21 = sphi 0, %s23
      %s24 = sphi 0, %s21
      %s25 = sphi 0, %s24
      %s41 = sphi 0, %s25
      %s45 = sphi 0, %s45
      %s47 = sphi 0, %s45
      %s48 = sphi 0, %s47
      %s62 = sphi 0, %s48
      %s68 = sphi 0, %s70
      %s71 = sphi 0, %s68
      %s72 = sphi 0, %s71
      %s88 = sphi 0, %s72
    $region4: #{tat_encoder_forward.1} parent=1 // loop_header_branch
      %14 = sbr.rel (%p12) target = $region8
    $region5: #{tat_encoder_forward.1} parent=1 // loop_body
      %s16 = ssub.s32 %s11, 1
      %s17 = ssub.s32 %s11, 2
      %s18 = sadd.s32 %s11, 1
      %s19 = ssub.s32 %s11, %s18
      %p20 = scmp.eq.s32.totalorder %s19, 0
      %s22 = sadd.s32 %s21, 1
      %s23 = scalar_select %p20, %s21, %s22
      %p26 = pneg %p20
      %p27 = scmp.eq.s32.totalorder %s11, 1
      %p28 = por %p26, %p27
      %p29 = scmp.ne.s32.totalorder %s21, %s24
      %p30 = scmp.eq.s32.totalorder %s11, 0
      %p31 = por %p29, %p30
      %p32 = scmp.ne.s32.totalorder %s21, %s24
      %p33 = scmp.eq.s32.totalorder %s16, 1
      %p34 = por %p32, %p33
      %p35 = scmp.ne.s32.totalorder %s24, %s25
      %p36 = scmp.eq.s32.totalorder %s16, 0
      %p37 = por %p35, %p36
      %p38 = scmp.ne.s32.totalorder %s24, %s25
      %p39 = scmp.eq.s32.totalorder %s17, 1
      %p40 = por %p38, %p39
      %p42 = scmp.ne.s32.totalorder %s25, %s41
      %p43 = scmp.eq.s32.totalorder %s17, 0
      %p44 = por %p42, %p43
      %s46 = sadd.s32 %s45, 1
      %p49 = scmp.eq.s32.totalorder %s11, 1
      %p50 = scmp.ne.s32.totalorder %s45, %s47
      %p51 = scmp.eq.s32.totalorder %s11, 0
      %p52 = por %p50, %p51
      %p53 = scmp.ne.s32.totalorder %s45, %s47
      %p54 = scmp.eq.s32.totalorder %s16, 1
      %p55 = por %p53, %p54
      %p56 = scmp.ne.s32.totalorder %s47, %s48
      %p57 = scmp.eq.s32.totalorder %s16, 0
      %p58 = por %p56, %p57
      %p59 = scmp.ne.s32.totalorder %s47, %s48
      %p60 = scmp.eq.s32.totalorder %s17, 1
      %p61 = por %p59, %p60
      %p63 = scmp.ne.s32.totalorder %s48, %s62
      %p64 = scmp.eq.s32.totalorder %s17, 0
      %p65 = por %p63, %p64
      %s66 = ssub.s32 %s11, %s18
      %p67 = scmp.eq.s32.totalorder %s66, 0
      %s69 = sadd.s32 %s68, 1
      %s70 = scalar_select %p67, %s68, %s69
      %p73 = pneg %p67
      %p74 = scmp.eq.s32.totalorder %s11, 1
      %p75 = por %p73, %p74
      %p76 = scmp.ne.s32.totalorder %s68, %s71
      %p77 = scmp.eq.s32.totalorder %s11, 0
      %p78 = por %p76, %p77
      %p79 = scmp.ne.s32.totalorder %s68, %s71
      %p80 = scmp.eq.s32.totalorder %s16, 1
      %p81 = por %p79, %p80
      %p82 = scmp.ne.s32.totalorder %s71, %s72
      %p83 = scmp.eq.s32.totalorder %s16, 0
      %p84 = por %p82, %p83
      %p85 = scmp.ne.s32.totalorder %s71, %s72
      %p86 = scmp.eq.s32.totalorder %s17, 1
      %p87 = por %p85, %p86
      %p89 = scmp.ne.s32.totalorder %s72, %s88
      %p90 = scmp.eq.s32.totalorder %s17, 0
      %p91 = por %p89, %p90
      %p92 = scmp.le.s32.totalorder 1, %s11
      %p93 = scmp.lt.s32.totalorder %s11, 3
      %p94 = pnand %p92, %p93
      %p95 = pneg %p94
      // Predicated region
      $region9: #{tat_encoder_forward.1} parent=5 // pred_check
        _
      $region10: #{tat_encoder_forward.1} parent=5 // pred_check_branch
        %97 = sbr.rel (%p94) target = $region12
      $region11: #{tat_encoder_forward.1} parent=5 // pred_region
        %s98 = ssub.s32 %s11, 1
        // Predicated region
        $region13: #{tat_encoder_forward.1} parent=11 // pred_check
          %p99 = pneg %p58
        $region14: #{tat_encoder_forward.1} parent=11 // pred_check_branch
          %101 = sbr.rel (%p99) target = $region16
        $region15: #{tat_encoder_forward.1} parent=11 // pred_region
          _
        $region16: #{tat_encoder_forward.1} parent=11 // pred_fallthru
          _
      $region12: #{tat_encoder_forward.1} parent=5 // pred_fallthru
        _
      %p102 = scmp.lt.s32.totalorder %s11, 2
      // Predicated region
      $region17: #{tat_encoder_forward.1} parent=5 // pred_check
        %p103 = pneg %p102
      $region18: #{tat_encoder_forward.1} parent=5 // pred_check_branch
        %105 = sbr.rel (%p103) target = $region20
      $region19: #{tat_encoder_forward.1} parent=5 // pred_region
        // Predicated region
        $region21: #{tat_encoder_forward.1} parent=19 // pred_check
          %p106 = pneg %p31
        $region22: #{tat_encoder_forward.1} parent=19 // pred_check_branch
          %108 = sbr.rel (%p106) target = $region24
        $region23: #{tat_encoder_forward.1} parent=19 // pred_region
          %p109 = scmp.lt.s32.totalorder %s11, 1
          %s110 = scalar_select %p109, %s11, 1
          %s111 = smul.addr %s110, 8
          %s112 = scalar_lea.vmem %s0, %s111
        $region24: #{tat_encoder_forward.1} parent=19 // pred_fallthru
          _
      $region20: #{tat_encoder_forward.1} parent=5 // pred_fallthru
        _
      %p113 = scmp.le.s32.totalorder 1, %s11
      %p114 = scmp.lt.s32.totalorder %s11, 3
      %p115 = pnand %p113, %p114
      %p116 = pneg %p115
      // Predicated region
      $region25: #{tat_encoder_forward.1} parent=5 // pred_check
        _
      $region26: #{tat_encoder_forward.1} parent=5 // pred_check_branch
        %118 = sbr.rel (%p115) target = $region28
      $region27: #{tat_encoder_forward.1} parent=5 // pred_region
        %s119 = ssub.s32 %s11, 1
        %p120 = scmp.lt.s32.totalorder %s16, 1
        %s121 = scalar_select %p120, %s16, 1
        %s122 = smul.addr %s121, 8
        %s123 = scalar_lea.vmem %s0, %s122
        %p124 = pneg %p37
        %p125 = pneg %p34
        %p126 = pneg %p58
        %p127 = pneg %p55
        %p128 = pneg %p84
        %p129 = pneg %p81
        %s130 = sand.u32 %s71, 1
        %s131 = scalar_lea.sflag [#allocation3], %s130
        %s132 = sand.u32 %s71, 1
        %s133 = smul.addr %s132, 8
        %s134 = scalar_lea.vmem [#allocation2], %s133
        %p135 = scmp.lt.s32.totalorder %s16, 1
        %s136 = scalar_select %p135, %s16, 1
        %s137 = smul.addr %s136, 8
        %s138 = scalar_lea.vmem %s0, %s137
        %v139 = vld [vmem:[%s138] sm:$0xff]
        %v140 = vmul.f32 %v139, 4.0
        %v141 = vfloor.f32 %v140
        %v142 = vmax.f32 %v141, 0.0
        %v143 = vmin.f32 %v142, 511.0
        %v144 = vld [vmem:[%s1] sm:$0x1]
        %v145 = vld [vmem:[%s1 + $0x1] sm:$0x1]
        %147 = vset.pattern.permute.xlu0 0
        %148 = vperm.xlu0 %147, %v143
        %v149 = vpop.permute.xlu0 %148
        %v151 = vlaneseq
        %v152 = vshrl.u32 %v151, 7
        %v153 = vsub.s32 0, %v152
        %v154 = vrot.slane %v144, %v153
        %v155 = vmul.f32 %v149, %v154
        %v156 = vlaneseq
        %v157 = vshrl.u32 %v156, 7
        %v158 = vsub.s32 0, %v157
        %v159 = vrot.slane %v145, %v158
        %v160 = vadd.f32 %v155, %v159
        %v161 = vand.u32 2147483647, %v160
        %vm162 = vcmp.le.f32.partialorder %v161, 0.7853982
        %vm163 = vcmp.lt.s32.totalorder %v160, 0
        %v164 = vand.u32 %v160, 2139095040
        %v165 = vshrl.u32 %v164, 23
        %v166 = vsub.s32 %v165, 127
        %v167 = vand.u32 2147483647, %v160
        %v168 = vand.u32 %v167, 8388607
        %v169 = vor.u32 %v168, 8388608
        %v170 = vsub.s32 0, %v169
        %v171 = vadd.s32 %v166, 1
        %vm172 = vcmp.gt.s32.totalorder %v171, 0
        %v173 = vsel %vm172, %v171, 0
        %v174 = vshrl.u32 %v173, 5
        %v175 = vand.u32 %v173, 31
        %v176 = vsub.s32 32, %v175
        %v177 = vshrl.u32 683565275, %v176
        %v178 = vshll.u32 683565275, %v175
        %v179 = vshrl.u32 2475754826, %v176
        %v180 = vor.u32 %v178, %v179
        %v181 = vshll.u32 2475754826, %v175
        %v182 = vshrl.u32 2131351028, %v176
        %v183 = vor.u32 %v181, %v182
        %v184 = vshll.u32 2131351028, %v175
        %v185 = vshrl.u32 2102212464, %v176
        %v186 = vor.u32 %v184, %v185
        %v187 = vshll.u32 2102212464, %v175
        %v188 = vshrl.u32 920167782, %v176
        %v189 = vor.u32 %v187, %v188
        %v190 = vshll.u32 920167782, %v175
        %v191 = vshrl.u32 1326507024, %v176
        %v192 = vor.u32 %v190, %v191
        %vm193 = vcmp.lt.s32.totalorder %v174, 1
        %vm194 = vcmp.lt.s32.totalorder %v174, 2
        %vm195 = vcmp.lt.s32.totalorder %v174, 3
        %vm196 = vcmp.lt.s32.totalorder %v174, 4
        %v197 = vsel %vm193, %v177, %v180
        %v198 = vsel %vm196, %v186, 2102212464
        %v199 = vsel %vm195, %v183, %v198
        %v200 = vsel %vm194, %v197, %v199
        %v201 = vsel %vm193, %v180, %v183
        %v202 = vsel %vm196, %v189, 920167782
        %v203 = vsel %vm195, %v186, %v202
        %v204 = vsel %vm194, %v201, %v203
        %v205 = vsel %vm193, %v183, %v186
        %v206 = vsel %vm196, %v192, 1326507024
        %v207 = vsel %vm195, %v189, %v206
        %v208 = vsel %vm194, %v205, %v207
        %v209 = vshll.u32 %v169, 8
        %v210 = vmul.u32.u64.compose %v209, %v208
        %v211 = vextract.low.u32 %v210
        %v212 = vextract.high.u32 %v210
        %v213 = vmul.u32.u64.compose %v209, %v204
        %v214 = vextract.low.u32 %v213
        %v215 = vextract.high.u32 %v213
        %v216 = vmul.u32 %v209, %v200
        %v217 = vadd.s32 %v212, %v214
        %vm218 = vc.u32 %v212, %v214
        %v219 = vadd.s32 %v215, 1
        %v220 = vsel %vm218, %v219, %v215
        %v221 = vadd.s32 %v216, %v220
        %v222 = vadd.s32 %v221, 536870912
        %v223 = vshrl.u32 %v222, 30
        %v224 = vshll.u32 %v223, 30
        %v225 = vsub.s32 %v221, %v224
        %vm226 = vcmp.lt.s32.totalorder %v225, 0
        %v227 = vsub.s32 0, %v225
        %v228 = vsel %vm226, %v227, %v225
        %v229 = vclz %v228
        %v230 = vsub.s32 %v229, 2
        %vm231 = vcmp.gt.s32.totalorder 0, %v230
        %v232 = vsel %vm231, 0, %v230
        %v233 = vsub.s32 32, %v232
        %v234 = vshll.u32 %v225, %v232
        %v235 = vshrl.u32 %v217, %v233
        %v236 = vor.u32 %v234, %v235
        %v237 = vsub.s32 4294967266, %v232
        %v238 = vadd.s32 %v237, 127
        %v239 = vshll.u32 %v238, 23
        %v240 = vor.u32 4788187, %v239
        %v241 = vand.u32 2147483647, %v240
        %v243 = vcvt.s32.f32 %v236
        %v244 = vmul.f32 %v243, %v241
        %v245 = vxor.u32 %v244, 2147483648
        %v246 = vsel %vm163, %v245, %v244
        %v247 = vsub.s32 4, %v223
        %v248 = vsel %vm163, %v247, %v223
        %v249 = vsel %vm162, %v160, %v246
        %v250 = vsel %vm162, 0, %v248
        %v251 = vcosq.f32.pop %v249
        %v252 = vsinq.f32.pop %v249
        %vm253 = vweird.f32 %v160
        %v254 = vadd.s32 %v250, 3
        %v255 = vand.u32 %v254, 3
        %vm256 = vcmp.lt.s32.totalorder %v255, 2
        %vm257 = vcmp.eq.s32.totalorder %v255, 0
        %v258 = vxor.u32 %v252, 2147483648
        %v259 = vsel %vm257, %v251, %v258
        %vm260 = vcmp.eq.s32.totalorder %v255, 2
        %v261 = vxor.u32 %v251, 2147483648
        %v262 = vsel %vm260, %v261, %v252
        %v263 = vsel %vm256, %v259, %v262
        %v264 = vsel %vm253, nan, %v263
        %265 = vst [vmem:[%s134] sm:$0xff] %v264
        %s266 = sand.u32 %s71, 1
        %s267 = scalar_lea.sflag [#allocation3], %s266
        %s268 = sand.u32 %s71, 1
        %s269 = smul.addr %s268, 8
        %s270 = scalar_lea.vmem [#allocation2], %s269
        // Predicated region
        $region29: #{tat_encoder_forward.1} parent=27 // pred_check
          %p271 = pneg %p81
        $region30: #{tat_encoder_forward.1} parent=27 // pred_check_branch
          %273 = sbr.rel (%p271) target = $region32
        $region31: #{tat_encoder_forward.1} parent=27 // pred_region
          %s275 = ssub.s32 128, 128
          %276 = vsyncadd %s267, %s275
          %s277 = smul.addr %s16, 128
          %s278 = scalar_lea.hbm %s2, %s277
          %s280 = sshll.u32 %s270, 4
          %s281 = int_to_ptr.vmem [resolvable:$true] %s280
          %283 = dma.vmem_to_hbm [thread:$0]  %s281, 128, %s278, %s267
        $region32: #{tat_encoder_forward.1} parent=27 // pred_fallthru
          _
      $region28: #{tat_encoder_forward.1} parent=5 // pred_fallthru
        _
      %p284 = scmp.le.s32.totalorder 2, %s11
      // Predicated region
      $region33: #{tat_encoder_forward.1} parent=5 // pred_check
        %p285 = pneg %p284
      $region34: #{tat_encoder_forward.1} parent=5 // pred_check_branch
        %287 = sbr.rel (%p285) target = $region36
      $region35: #{tat_encoder_forward.1} parent=5 // pred_region
        %s288 = ssub.s32 %s11, 2
        // Predicated region
        $region37: #{tat_encoder_forward.1} parent=35 // pred_check
          %p289 = pneg %p87
        $region38: #{tat_encoder_forward.1} parent=35 // pred_check_branch
          %291 = sbr.rel (%p289) target = $region40
        $region39: #{tat_encoder_forward.1} parent=35 // pred_region
          %s292 = sand.u32 %s72, 1
          %s293 = scalar_lea.sflag [#allocation3], %s292
          %s294 = sand.u32 %s72, 1
          %s295 = smul.addr %s294, 8
          %s296 = scalar_lea.vmem [#allocation2], %s295
          %297 = dma.done %s293, 128
        $region40: #{tat_encoder_forward.1} parent=35 // pred_fallthru
          _
      $region36: #{tat_encoder_forward.1} parent=5 // pred_fallthru
        _
    $region6: #{tat_encoder_forward.1} parent=1 // loop_footer
      %s15 = sadd.s32 1, %s11
    $region7: #{tat_encoder_forward.1} parent=1 // loop_footer_branch
      %10 = sbr.rel target = $region3
    $region8: #{tat_encoder_forward.1} parent=1 // loop_exit
      _
    %298 = vsyncpa [#allocation3], 1
    %s299 = scalar_lea.sflag [#allocation3], 1
    %300 = vsyncpa %s299, 1

</llo_original>
